<compile_context>
chip_gen: v5e
topology: v5e:2x2
jax: 0.10.0
libtpu: 0.0.40
codegen_flags: <defaults>
</compile_context>

<pallas_src>
import math

import jax
import jax.numpy as jnp
from jax.experimental import pallas as pl
from jax.experimental.pallas import tpu as pltpu

# ---- synthetic module configuration (small, deterministic) -----------------
N_USERS = 16          # stand-in for len(user_mapping) from the MovieLens csv
OUT_FEATURES = 64     # Decoder(out_features=64)
DIM_READOUT = 1       # Decoder(dim_readout=1)
BATCH = 4             # number of "rows" after reshape(-1, N_users)


def _round_up(x, m):
    return ((x + m - 1) // m) * m


def decoder_kernel(z_ref, wc_ref, beff_ref, o_ref):
    """Fused Decoder forward over one batch tile.

    z_ref    : (TB, K) VMEM  flattened input tile, K = N_USERS * OUT_FEATURES
    wc_ref   : (1, K)  VMEM  fused weight (outer(w2, w1)), f32, resident
    beff_ref : (1, 1)  SMEM  fused bias   (b1 * sum(w2) + b2)
    o_ref    : (TB, 1) VMEM  per-row output tile
    """
    TB, K = z_ref.shape
    b_eff = beff_ref[0, 0]                         # scalar path (SMEM), no vld

    # VPU lane-group partial sums.  Each slice is a static, 128-aligned lane
    # group (no relayout); wc broadcast over rows reuses one sublane-broadcast
    # vreg per group.  Compute slots have large slack vs. the input DMA.
    g0 = 128
    acc = z_ref[:, 0:g0].astype(jnp.float32) * wc_ref[:, 0:g0]
    for g in range(1, K // 128):
        lo, hi = g * 128, (g + 1) * 128
        acc = acc + z_ref[:, lo:hi].astype(jnp.float32) * wc_ref[:, lo:hi]

    # One cross-lane (XLU) reduce of the (TB, 128) partial sums -> (TB, 1).
    row = jnp.sum(acc, axis=-1, keepdims=True)
    o_ref[...] = jnp.maximum(row + b_eff, 0.0).astype(o_ref.dtype)


def decoder_forward(z_2d, w1, b1, w2, b2, *, tb=2048):
    """z_2d: (B*N_USERS, OUT_FEATURES) -> (B, 1) float32.

    `tb` is the batch tile (rows of the flattened (B, K) input per grid step).
    Default 2048 -> 16 MiB of double-buffered input; if you raise it, also
    raise vmem_limit_bytes and respect v7x's 64 MiB per-TC physical VMEM.
    """
    M, F = z_2d.shape
    assert M % N_USERS == 0 and F == OUT_FEATURES
    # The algebraic lin1/lin2 fusion is only valid for dim_readout == 1.
    assert w1.shape == (DIM_READOUT, F) and DIM_READOUT == 1, w1.shape
    assert b1.shape == (1,) and w2.shape == (1, N_USERS) and b2.shape == (1,)

    B = M // N_USERS
    K = N_USERS * F                      # 1024 -> exact multiple of 128 lanes
    assert K % 128 == 0

    # Row-major flatten: z_flat[b, n*F + f] == z_2d[b*N_USERS + n, f].
    # Metadata-only reshape (contiguous), no HBM copy.
    z_flat = z_2d.reshape(B, K)

    # Algebraic fusion of lin1/lin2 (done once, outside the kernel).
    wc = (w2.reshape(N_USERS, 1).astype(jnp.float32)
          * w1.reshape(1, F).astype(jnp.float32)).reshape(1, K)             # (1, K)
    b_eff = (b1[0] * jnp.sum(w2) + b2[0]).reshape(1, 1).astype(jnp.float32)  # (1, 1)

    # ---- batch tile selection: NO input padding (Pallas masks the ragged
    # last block); keep the parallel grid even so v7x's 2 TCs split evenly.
    if B <= tb:
        TB = B                                      # single full-extent block
    else:
        assert tb % 128 == 0, "tb must be a multiple of 128"
        TB = tb
        n = pl.cdiv(B, TB)
        if n % 2 == 1:
            TB = min(tb, _round_up(pl.cdiv(B, n + 1), 128))
    grid = (pl.cdiv(B, TB),)

    out = pl.pallas_call(
        decoder_kernel,
        out_shape=jax.ShapeDtypeStruct((B, 1), jnp.float32),
        grid_spec=pltpu.PrefetchScalarGridSpec(
            num_scalar_prefetch=0,
            grid=grid,
            in_specs=[
                # streamed, double-buffered batch tiles (ragged tail masked)
                pl.BlockSpec((TB, K), lambda i: (i, 0)),
                # fused weight stays resident (same block every step)
                pl.BlockSpec((1, K), lambda i: (0, 0)),
                # fused bias as an SMEM scalar
                pl.BlockSpec(memory_space=pltpu.MemorySpace.SMEM),
            ],
            out_specs=pl.BlockSpec((TB, 1), lambda i: (i, 0)),
        ),
        compiler_params=pltpu.CompilerParams(
            # batch tiles are independent -> shard across v7x's 2 TensorCores
            # (harmless no-op on single-TC v5e/v6e).
            dimension_semantics=("parallel",),
            # TB=2048 needs ~17 MiB (2 x 8 MiB input buffers + extras); 32 MiB
            # raises v5e's 16 MiB default and is safe on v6e/v7x.
            vmem_limit_bytes=32 << 20,
        ),
        # Memory-bound GEMV roofline hint for XLA's surrounding scheduler.
        cost_estimate=pl.CostEstimate(
            flops=2 * B * K,
            bytes_accessed=(B * K + K + B) * 4,
            transcendentals=0,
        ),
    )(z_flat, wc, b_eff)

    return out                                       # already (B, 1)


def decoder_reference(z_2d, w1, b1, w2, b2):
    """Pure-JAX reference mirroring the PyTorch forward exactly."""
    s = z_2d @ w1.T + b1                 # (M, 1)
    s = s.reshape(-1, N_USERS)           # (B, N)
    out = s @ w2.T + b2                  # (B, 1)
    return jnp.maximum(out, 0.0)


if __name__ == "__main__":
    key = jax.random.PRNGKey(0)
    k_z, k_w1, k_b1, k_w2, k_b2, k_zbig = jax.random.split(key, 6)

    # Deterministic "PyTorch-Linear-style" init: U(-1/sqrt(fan_in), 1/sqrt(fan_in))
    bound1 = 1.0 / math.sqrt(OUT_FEATURES)
    bound2 = 1.0 / math.sqrt(N_USERS)
    w1 = jax.random.uniform(k_w1, (DIM_READOUT, OUT_FEATURES),
                            jnp.float32, -bound1, bound1)   # lin1.weight
    b1 = jax.random.uniform(k_b1, (DIM_READOUT,),
                            jnp.float32, -bound1, bound1)   # lin1.bias
    w2 = jax.random.uniform(k_w2, (1, N_USERS),
                            jnp.float32, -bound2, bound2)   # lin2.weight
    b2 = jax.random.uniform(k_b2, (1,),
                            jnp.float32, -bound2, bound2)   # lin2.bias

    # --- small shape consistent with the module -----------------------------
    z = jax.random.normal(k_z, (BATCH * N_USERS, OUT_FEATURES), jnp.float32)
    out = jax.block_until_ready(decoder_forward(z, w1, b1, w2, b2))
    ref = decoder_reference(z, w1, b1, w2, b2)
    assert out.shape == (BATCH, 1)
    assert jnp.allclose(out, ref, atol=1e-4, rtol=1e-4), (out, ref)

    # --- larger batch: exercises the multi-tile streaming grid, the even-grid
    # rebalance (tb=2048 -> TB=1152, 4 tiles), and the masked ragged last tile
    # -- with no wrapper-side padding of the input.
    big_b = 4500
    z_big = jax.random.normal(k_zbig, (big_b * N_USERS, OUT_FEATURES), jnp.float32)
    out_big = jax.block_until_ready(decoder_forward(z_big, w1, b1, w2, b2))
    ref_big = decoder_reference(z_big, w1, b1, w2, b2)
    assert out_big.shape == (big_b, 1)
    assert jnp.allclose(out_big, ref_big, atol=1e-4, rtol=1e-4)

    print("KERNEL_OK")
</pallas_src>

<mosaic_0001>
module attributes {stable_mosaic.version = 11 : i64} {
  func.func @decoder_kernel(%arg0: i32, %arg1: memref<4x1024xf32, #tpu.memory_space<vmem>>, %arg2: memref<1x1024xf32, #tpu.memory_space<vmem>>, %arg3: memref<1x1xf32, #tpu.memory_space<smem>>, %arg4: memref<4x1xf32, #tpu.memory_space<vmem>>) attributes {dimension_semantics = [#tpu.dimension_semantics<parallel>], iteration_bounds = array<i64: 1>, scalar_prefetch = 0 : i64, scratch_operands = 0 : i64, tpu.core_type = #tpu.core_type<tc>, window_params = [{transform_indices = @transform_0, window_bounds = array<i64: 4, 1024>}, {pipeline_mode = #tpu.pipeline_mode<synchronous>, transform_indices = @transform_1, window_bounds = array<i64: 1, 1024>}, {transform_indices = @transform_2, window_bounds = array<i64: 1, 1>}, {transform_indices = @transform_3, window_bounds = array<i64: 4, 1>}]} {
    %c0 = arith.constant 0 : index
    %c0_0 = arith.constant 0 : index
    %0 = memref.load %arg3[%c0, %c0_0] : memref<1x1xf32, #tpu.memory_space<smem>>
    %c0_1 = arith.constant 0 : index
    %c0_2 = arith.constant 0 : index
    %1 = vector.load %arg1[%c0_1, %c0_2] : memref<4x1024xf32, #tpu.memory_space<vmem>>, vector<4x128xf32>
    %c0_3 = arith.constant 0 : index
    %c0_4 = arith.constant 0 : index
    %2 = vector.load %arg2[%c0_3, %c0_4] : memref<1x1024xf32, #tpu.memory_space<vmem>>, vector<1x128xf32>
    %3 = vector.broadcast %2 : vector<1x128xf32> to vector<4x128xf32>
    %4 = arith.mulf %1, %3 : vector<4x128xf32>
    %c0_5 = arith.constant 0 : index
    %c128 = arith.constant 128 : index
    %5 = vector.load %arg1[%c0_5, %c128] : memref<4x1024xf32, #tpu.memory_space<vmem>>, vector<4x128xf32>
    %c0_6 = arith.constant 0 : index
    %c128_7 = arith.constant 128 : index
    %6 = vector.load %arg2[%c0_6, %c128_7] : memref<1x1024xf32, #tpu.memory_space<vmem>>, vector<1x128xf32>
    %7 = vector.broadcast %6 : vector<1x128xf32> to vector<4x128xf32>
    %8 = arith.mulf %5, %7 : vector<4x128xf32>
    %9 = arith.addf %4, %8 : vector<4x128xf32>
    %c0_8 = arith.constant 0 : index
    %c256 = arith.constant 256 : index
    %10 = vector.load %arg1[%c0_8, %c256] : memref<4x1024xf32, #tpu.memory_space<vmem>>, vector<4x128xf32>
    %c0_9 = arith.constant 0 : index
    %c256_10 = arith.constant 256 : index
    %11 = vector.load %arg2[%c0_9, %c256_10] : memref<1x1024xf32, #tpu.memory_space<vmem>>, vector<1x128xf32>
    %12 = vector.broadcast %11 : vector<1x128xf32> to vector<4x128xf32>
    %13 = arith.mulf %10, %12 : vector<4x128xf32>
    %14 = arith.addf %9, %13 : vector<4x128xf32>
    %c0_11 = arith.constant 0 : index
    %c384 = arith.constant 384 : index
    %15 = vector.load %arg1[%c0_11, %c384] : memref<4x1024xf32, #tpu.memory_space<vmem>>, vector<4x128xf32>
    %c0_12 = arith.constant 0 : index
    %c384_13 = arith.constant 384 : index
    %16 = vector.load %arg2[%c0_12, %c384_13] : memref<1x1024xf32, #tpu.memory_space<vmem>>, vector<1x128xf32>
    %17 = vector.broadcast %16 : vector<1x128xf32> to vector<4x128xf32>
    %18 = arith.mulf %15, %17 : vector<4x128xf32>
    %19 = arith.addf %14, %18 : vector<4x128xf32>
    %c0_14 = arith.constant 0 : index
    %c512 = arith.constant 512 : index
    %20 = vector.load %arg1[%c0_14, %c512] : memref<4x1024xf32, #tpu.memory_space<vmem>>, vector<4x128xf32>
    %c0_15 = arith.constant 0 : index
    %c512_16 = arith.constant 512 : index
    %21 = vector.load %arg2[%c0_15, %c512_16] : memref<1x1024xf32, #tpu.memory_space<vmem>>, vector<1x128xf32>
    %22 = vector.broadcast %21 : vector<1x128xf32> to vector<4x128xf32>
    %23 = arith.mulf %20, %22 : vector<4x128xf32>
    %24 = arith.addf %19, %23 : vector<4x128xf32>
    %c0_17 = arith.constant 0 : index
    %c640 = arith.constant 640 : index
    %25 = vector.load %arg1[%c0_17, %c640] : memref<4x1024xf32, #tpu.memory_space<vmem>>, vector<4x128xf32>
    %c0_18 = arith.constant 0 : index
    %c640_19 = arith.constant 640 : index
    %26 = vector.load %arg2[%c0_18, %c640_19] : memref<1x1024xf32, #tpu.memory_space<vmem>>, vector<1x128xf32>
    %27 = vector.broadcast %26 : vector<1x128xf32> to vector<4x128xf32>
    %28 = arith.mulf %25, %27 : vector<4x128xf32>
    %29 = arith.addf %24, %28 : vector<4x128xf32>
    %c0_20 = arith.constant 0 : index
    %c768 = arith.constant 768 : index
    %30 = vector.load %arg1[%c0_20, %c768] : memref<4x1024xf32, #tpu.memory_space<vmem>>, vector<4x128xf32>
    %c0_21 = arith.constant 0 : index
    %c768_22 = arith.constant 768 : index
    %31 = vector.load %arg2[%c0_21, %c768_22] : memref<1x1024xf32, #tpu.memory_space<vmem>>, vector<1x128xf32>
    %32 = vector.broadcast %31 : vector<1x128xf32> to vector<4x128xf32>
    %33 = arith.mulf %30, %32 : vector<4x128xf32>
    %34 = arith.addf %29, %33 : vector<4x128xf32>
    %c0_23 = arith.constant 0 : index
    %c896 = arith.constant 896 : index
    %35 = vector.load %arg1[%c0_23, %c896] : memref<4x1024xf32, #tpu.memory_space<vmem>>, vector<4x128xf32>
    %c0_24 = arith.constant 0 : index
    %c896_25 = arith.constant 896 : index
    %36 = vector.load %arg2[%c0_24, %c896_25] : memref<1x1024xf32, #tpu.memory_space<vmem>>, vector<1x128xf32>
    %37 = vector.broadcast %36 : vector<1x128xf32> to vector<4x128xf32>
    %38 = arith.mulf %35, %37 : vector<4x128xf32>
    %39 = arith.addf %34, %38 : vector<4x128xf32>
    %cst = arith.constant dense<0.000000e+00> : vector<4xf32>
    %40 = vector.multi_reduction <add>, %39, %cst [1] : vector<4x128xf32> to vector<4xf32>
    %41 = vector.shape_cast %40 : vector<4xf32> to vector<4x1xf32>
    %42 = vector.broadcast %0 : f32 to vector<4x1xf32>
    %43 = arith.addf %41, %42 : vector<4x1xf32>
    %cst_26 = arith.constant 0.000000e+00 : f32
    %44 = vector.broadcast %cst_26 : f32 to vector<4x1xf32>
    %45 = arith.maximumf %43, %44 : vector<4x1xf32>
    %c0_27 = arith.constant 0 : index
    %c0_28 = arith.constant 0 : index
    %46 = vector.load %arg4[%c0_27, %c0_28] : memref<4x1xf32, #tpu.memory_space<vmem>>, vector<4x1xf32>
    tpu.vector_store %arg4[%c0_27, %c0_28], %45 {strides = array<i32>} : memref<4x1xf32, #tpu.memory_space<vmem>>, vector<4x1xf32>,
    return
  }
  func.func @transform_0(%arg0: i32) -> (i32, i32) {
    %c0_i32 = arith.constant 0 : i32
    %c0_i32_0 = arith.constant 0 : i32
    return %arg0, %c0_i32 : i32, i32
  }
  func.func @transform_1(%arg0: i32) -> (i32, i32) {
    %c0_i32 = arith.constant 0 : i32
    %c0_i32_0 = arith.constant 0 : i32
    %c0_i32_1 = arith.constant 0 : i32
    return %c0_i32, %c0_i32_0 : i32, i32
  }
  func.func @transform_2(%arg0: i32) -> (i32, i32) {
    %c0_i32 = arith.constant 0 : i32
    %c0_i32_0 = arith.constant 0 : i32
    %c0_i32_1 = arith.constant 0 : i32
    return %c0_i32, %c0_i32_0 : i32, i32
  }
  func.func @transform_3(%arg0: i32) -> (i32, i32) {
    %c0_i32 = arith.constant 0 : i32
    %c0_i32_0 = arith.constant 0 : i32
    return %arg0, %c0_i32 : i32, i32
  }
}

</mosaic_0001>

<llo_original>
// kernel: tpu_custom_call.1
$region0: #{tpu_custom_call.1}
  #allocation0 [shape = 'u32[]', space=smem, size = 0x4, offset = 0x4, fixed_abs, tag = 'smem constant byte address 0x4 - core index']
  #allocation1 [shape = 'u32[72,128]{1,0:T(1,128)}', space=vmem, size = 0x9000, scoped, tag = 'internal scratch']
  #allocation2 [shape = 'f32[1,1]{1,0:T(1,128)S(6)}', space=smem, size = 0x200, scoped, tag = 'scoped memory for tpu_custom_call.1']
  %s0 = inlined_call_operand.hbm [shape: f32[4,1024], index: 0, kind: input, shape index: {}]
  %s1 = inlined_call_operand.hbm [shape: f32[1,1024], index: 1, kind: input, shape index: {}]
  %s2 = inlined_call_operand.<no memory space> [shape: f32[1,1], index: 2, kind: input, shape index: {}]
  %s3 = inlined_call_operand.vmem [shape: f32[4,1], index: 3, kind: output, shape index: {}]
  %s4 = sld [smem:[#allocation0]]
  $region30: #{tpu_custom_call.1} parent=0
    _
  %s6 = ssub.s32 1, %s4
  %s7 = scalar_select 0, %s6, %s4
  %8 = sst [smem:[#allocation2]] %s2
  $region1: #{tpu_custom_call.1} parent=0
    #allocation3 [shape = 'u8[16384]{0}', space=vmem, size = 0x4000, scoped, tag = 'input window, operand 0, single buffered']
    #allocation4 [shape = 's32[1]{0}', space=sflag, size = 0x4, scoped, tag = 'scoped memory for tpu_custom_call.1']
    #allocation5 [shape = 'u8[4096]{0}', space=vmem, size = 0x1000, scoped, tag = 'input window, operand 1, single buffered']
    #allocation6 [shape = 's32[1]{0}', space=sflag, size = 0x4, scoped, tag = 'scoped memory for tpu_custom_call.1']
    %9 = vsyncpa [#allocation4], 0
    %10 = vsyncpa [#allocation6], 0
    // Predicated region
    $region2: #{tpu_custom_call.1} parent=1 // pred_check
      _
    $region3: #{tpu_custom_call.1} parent=1 // pred_check_branch
      %12 = sbr.rel (0) target = $region5
    $region4: #{tpu_custom_call.1} parent=1 // pred_region
      %14 = vsyncadd [#allocation4], 0
      %s16 = sshll.u32 %s0, 4
      %s17 = int_to_ptr.hbm [resolvable:$true] %s16
      %s18 = sshll.u32 [#allocation3], 4
      %s19 = int_to_ptr.vmem [resolvable:$true] %s18
      %21 = dma.hbm_to_vmem [thread:$0]  %s17, 512, %s19, [#allocation4]
    $region5: #{tpu_custom_call.1} parent=1 // pred_fallthru
      _
    // Predicated region
    $region6: #{tpu_custom_call.1} parent=1 // pred_check
      _
    $region7: #{tpu_custom_call.1} parent=1 // pred_check_branch
      %23 = sbr.rel (0) target = $region9
    $region8: #{tpu_custom_call.1} parent=1 // pred_region
      %25 = vsyncadd [#allocation6], 0
      %s27 = sshll.u32 %s1, 4
      %s28 = int_to_ptr.hbm [resolvable:$true] %s27
      %s29 = sshll.u32 [#allocation5], 4
      %s30 = int_to_ptr.vmem [resolvable:$true] %s29
      %32 = dma.hbm_to_vmem [thread:$0]  %s28, 128, %s30, [#allocation6]
    $region9: #{tpu_custom_call.1} parent=1 // pred_fallthru
      _
    // Predicated region
    $region10: #{tpu_custom_call.1} parent=1 // pred_check
      _
    $region11: #{tpu_custom_call.1} parent=1 // pred_check_branch
      %34 = sbr.rel (0) target = $region13
    $region12: #{tpu_custom_call.1} parent=1 // pred_region
      _
    $region13: #{tpu_custom_call.1} parent=1 // pred_fallthru
      _
    // Predicated region
    $region14: #{tpu_custom_call.1} parent=1 // pred_check
      _
    $region15: #{tpu_custom_call.1} parent=1 // pred_check_branch
      %36 = sbr.rel (0) target = $region17
    $region16: #{tpu_custom_call.1} parent=1 // pred_region
      %38 = dma.done [#allocation4], 512
    $region17: #{tpu_custom_call.1} parent=1 // pred_fallthru
      _
    // Predicated region
    $region18: #{tpu_custom_call.1} parent=1 // pred_check
      _
    $region19: #{tpu_custom_call.1} parent=1 // pred_check_branch
      %40 = sbr.rel (0) target = $region21
    $region20: #{tpu_custom_call.1} parent=1 // pred_region
      %42 = dma.done [#allocation6], 128
    $region21: #{tpu_custom_call.1} parent=1 // pred_fallthru
      _
    %s43 = sld [smem:[#allocation2]]
    %v44 = vld [vmem:[#allocation3] sm:$0xf]
    %v45 = vld [vmem:[#allocation5] sm:$0x1]
    %v47 = vperm.slane %v45, 0
    %v49 = vmul.f32 %v44, %v47
    %v50 = vld [vmem:[#allocation3 + $0x4] sm:$0xf]
    %v51 = vld [vmem:[#allocation5 + $0x1] sm:$0x1]
    %v53 = vperm.slane %v51, 0
    %v55 = vmul.f32 %v50, %v53
    %v56 = vadd.f32 %v49, %v55
    %v57 = vld [vmem:[#allocation3 + $0x8] sm:$0xf]
    %v58 = vld [vmem:[#allocation5 + $0x2] sm:$0x1]
    %v60 = vperm.slane %v58, 0
    %v62 = vmul.f32 %v57, %v60
    %v63 = vadd.f32 %v56, %v62
    %v64 = vld [vmem:[#allocation3 + $0xc] sm:$0xf]
    %v65 = vld [vmem:[#allocation5 + $0x3] sm:$0x1]
    %v67 = vperm.slane %v65, 0
    %v69 = vmul.f32 %v64, %v67
    %v70 = vadd.f32 %v63, %v69
    %v71 = vld [vmem:[#allocation3 + $0x10] sm:$0xf]
    %v72 = vld [vmem:[#allocation5 + $0x4] sm:$0x1]
    %v74 = vperm.slane %v72, 0
    %v76 = vmul.f32 %v71, %v74
    %v77 = vadd.f32 %v70, %v76
    %v78 = vld [vmem:[#allocation3 + $0x14] sm:$0xf]
    %v79 = vld [vmem:[#allocation5 + $0x5] sm:$0x1]
    %v81 = vperm.slane %v79, 0
    %v83 = vmul.f32 %v78, %v81
    %v84 = vadd.f32 %v77, %v83
    %v85 = vld [vmem:[#allocation3 + $0x18] sm:$0xf]
    %v86 = vld [vmem:[#allocation5 + $0x6] sm:$0x1]
    %v88 = vperm.slane %v86, 0
    %v90 = vmul.f32 %v85, %v88
    %v91 = vadd.f32 %v84, %v90
    %v92 = vld [vmem:[#allocation3 + $0x1c] sm:$0xf]
    %v93 = vld [vmem:[#allocation5 + $0x7] sm:$0x1]
    %v95 = vperm.slane %v93, 0
    %v97 = vmul.f32 %v92, %v95
    %v98 = vadd.f32 %v91, %v97
    %vm99 = vcmask 1043456
    %v100 = vsel %vm99, %v98, 0.0
    %101 = vadd.xlane.f32.xlu0 %v100
    %v102 = vpop.xlane.xlu0 %101
    %v103 = vstv %s43
    %v104 = vadd.f32 %v102, %v103
    %v105 = vmax.f32 %v104, 0.0
    %vm106 = vcmask 3072
    %107 = vst.msk [vmem:[%s3] sm:$0xf] %vm106, %v105
    // Predicated region
    $region22: #{tpu_custom_call.1} parent=1 // pred_check
      _
    $region23: #{tpu_custom_call.1} parent=1 // pred_check_branch
      %109 = sbr.rel (0) target = $region25
    $region24: #{tpu_custom_call.1} parent=1 // pred_region
      _
    $region25: #{tpu_custom_call.1} parent=1 // pred_fallthru
      _
    // Predicated region
    $region26: #{tpu_custom_call.1} parent=1 // pred_check
      _
    $region27: #{tpu_custom_call.1} parent=1 // pred_check_branch
      %111 = sbr.rel (0) target = $region29
    $region28: #{tpu_custom_call.1} parent=1 // pred_region
      _
    $region29: #{tpu_custom_call.1} parent=1 // pred_fallthru
      _
    %112 = vsyncpa [#allocation4], 1
    %113 = vsyncpa [#allocation6], 1

</llo_original>
